<compile_context>
chip_gen: v5e
topology: v5e:2x2
jax: 0.10.0
libtpu: 0.0.40
codegen_flags: <defaults>
</compile_context>

<pallas_src>
import functools

import jax
import jax.numpy as jnp
from jax.experimental import pallas as pl
from jax.experimental.pallas import tpu as pltpu


def _round_up(v, m):
    return (v + m - 1) // m * m


def _double_conv_kernel(x_ref, w1_ref, b1_ref, w2_ref, b2_ref, mask_ref, o_ref,
                        *, H, W, imgs):
    """Fused DoubleConv for `imgs` images, channels-on-sublane / pixels-on-lane.

    x_ref    : (imgs, Cin_p, H*W)     input block, pixels on the lane axis (VMEM)
    w1_ref   : (Cmid_p, 9*Cin_p)      conv1 weights, fused tap-major K (zero-padded)
    b1_ref   : (Cmid_p, 1)
    w2_ref   : (Cout, 9*Cmid_p)       conv2 weights, fused tap-major K (zero-padded)
    b2_ref   : (Cout, 1)
    mask_ref : (9, imgs*H*W)          0/1 boundary mask per tap (zero-padding semantics)
    o_ref    : (imgs, Cout, H*W)      lane-dense output (already NCHW order)
    """
    HW = H * W
    L = imgs * HW

    # Fold this block's images into the lane axis: (Cin_p, imgs*HW).
    if imgs == 1:
        x = x_ref[0]
    else:
        x = jnp.concatenate([x_ref[i] for i in range(imgs)], axis=1)

    masks = mask_ref[...]                                   # (9, L), loaded once

    def conv3x3_relu(inp, w_ref, b_ref):
        # Stacked patch (9*C, L): tap-major, each tap a lane-rolled, boundary-masked
        # copy of inp.  Masks reproduce padding=1 zero borders and also zero any
        # cross-image pixels introduced by rolling across the folded batch.
        chunks = []
        for ky in range(3):
            for kx in range(3):
                tap = ky * 3 + kx
                s = (ky - 1) * W + (kx - 1)      # out[p] reads in[p + s] when valid
                if s == 0:
                    chunks.append(inp)           # center tap: no shift, all-ones mask
                else:
                    rolled = pltpu.roll(inp, shift=(-s) % L, axis=1)
                    chunks.append(rolled * masks[tap:tap + 1, :])
        patch = jnp.concatenate(chunks, axis=0)              # (9*C, L), 8-aligned chunks
        # Single MXU push per conv: (Cout, 9*C) @ (9*C, L), f32 accumulation.
        y = jnp.dot(w_ref[...], patch, preferred_element_type=jnp.float32)
        return jnp.maximum(y + b_ref[...], 0.0)              # bias broadcast + ReLU

    mid = conv3x3_relu(x, w1_ref, b1_ref)                    # (Cmid_p, L)
    # Dropout2d(p=0.2): identity in eval/inference mode.
    out = conv3x3_relu(mid, w2_ref, b2_ref)                  # (Cout, L)

    for i in range(imgs):
        o_ref[i] = out[:, i * HW:(i + 1) * HW].astype(o_ref.dtype)


def _make_tap_masks(H, W):
    """(9, H*W) float32 masks: 1 where the shifted source pixel is inside the image."""
    yy = jnp.arange(H).reshape(H, 1)
    xx = jnp.arange(W).reshape(1, W)
    masks = []
    for ky in range(3):
        for kx in range(3):
            dy, dx = ky - 1, kx - 1
            valid = ((yy + dy >= 0) & (yy + dy < H) &
                     (xx + dx >= 0) & (xx + dx < W))
            masks.append(valid.reshape(H * W))
    return jnp.stack(masks, axis=0).astype(jnp.float32)


def _fuse_conv_weight(w, cin_p):
    """OIHW (Cout, Cin, 3, 3) -> (Cout, 9*cin_p) fused tap-major K.

    Column tap*cin_p + ci holds w[:, ci, ky, kx] (tap = ky*3 + kx); input channels are
    zero-padded to cin_p so each tap's K-chunk is sublane-tile aligned in the kernel.
    """
    cout, cin = w.shape[0], w.shape[1]
    w_t = jnp.transpose(w, (2, 3, 0, 1)).reshape(9, cout, cin)     # [tap, co, ci]
    w_p = jnp.zeros((9, cout, cin_p), w.dtype).at[:, :, :cin].set(w_t)
    return jnp.transpose(w_p, (1, 0, 2)).reshape(cout, 9 * cin_p)  # [co, tap*cin_p+ci]


def init_double_conv_params(w1, b1, w2, b2, H, W):
    """One-time parameter re-layout + tap-mask build (hoisted out of the forward pass)."""
    Cmid, Cin = w1.shape[0], w1.shape[1]
    Cout = w2.shape[0]
    Cin_p = _round_up(Cin, 8)
    Cmid_p = _round_up(Cmid, 8)

    w1_f = _fuse_conv_weight(w1, Cin_p)                        # (Cmid, 9*Cin_p)
    w1_f = jnp.zeros((Cmid_p, 9 * Cin_p), w1.dtype).at[:Cmid].set(w1_f)
    b1_c = jnp.zeros((Cmid_p, 1), b1.dtype).at[:Cmid, 0].set(b1)
    w2_f = _fuse_conv_weight(w2, Cmid_p)                       # (Cout, 9*Cmid_p)
    b2_c = b2.reshape(Cout, 1)
    masks = _make_tap_masks(H, W)                              # (9, H*W)
    return dict(w1=w1_f, b1=b1_c, w2=w2_f, b2=b2_c, masks=masks)


def _tensorcores_per_chip():
    """Heuristic: 2 TensorCores per chip on v7x, 1 on v5e/v6e. Safe default is 1."""
    try:
        kind = jax.devices()[0].device_kind.lower()
    except Exception:
        kind = ""
    return 2 if ("v7" in kind or "7x" in kind) else 1


@jax.jit
def double_conv(x_nchw, params):
    """DoubleConv forward. x_nchw: (N, Cin, H, W) f32; params from init_double_conv_params."""
    N, Cin, H, W = x_nchw.shape
    HW = H * W
    Cin_p = params["w1"].shape[1] // 9
    Cmid_p = params["w1"].shape[0]
    Cout = params["w2"].shape[0]

    # One grid step on single-TC chips (v5e/v6e); 2 lane blocks on v7x so both
    # TensorCores get work.  Each block owns `imgs` whole images folded into lanes.
    blocks = min(N, _tensorcores_per_chip())
    while N % blocks:
        blocks -= 1
    imgs = N // blocks

    # NCHW is already (N, C, H*W)-contiguous: reshape is free; pad channels to tile.
    x_flat = x_nchw.reshape(N, Cin, HW)
    if Cin_p != Cin:
        x_flat = jnp.pad(x_flat, ((0, 0), (0, Cin_p - Cin), (0, 0)))
    masks = jnp.tile(params["masks"], (1, imgs))               # (9, imgs*HW)

    kernel = functools.partial(_double_conv_kernel, H=H, W=W, imgs=imgs)

    out_flat = pl.pallas_call(
        kernel,
        out_shape=jax.ShapeDtypeStruct((N, Cout, HW), jnp.float32),
        grid_spec=pltpu.PrefetchScalarGridSpec(
            num_scalar_prefetch=0,
            grid=(blocks,),
            in_specs=[
                pl.BlockSpec((imgs, Cin_p, HW), lambda n: (n, 0, 0)),
                pl.BlockSpec((Cmid_p, 9 * Cin_p), lambda n: (0, 0)),
                pl.BlockSpec((Cmid_p, 1), lambda n: (0, 0)),
                pl.BlockSpec((Cout, 9 * Cmid_p), lambda n: (0, 0)),
                pl.BlockSpec((Cout, 1), lambda n: (0, 0)),
                pl.BlockSpec((9, imgs * HW), lambda n: (0, 0)),
            ],
            out_specs=pl.BlockSpec((imgs, Cout, HW), lambda n: (n, 0, 0)),
        ),
        compiler_params=pltpu.CompilerParams(
            dimension_semantics=("parallel",)),   # megacore split on v7x (no-op on v5e/v6e)
    )(x_flat, params["w1"], params["b1"], params["w2"], params["b2"], masks)

    # Already NCHW order: free reshape back to (N, Cout, H, W).
    return out_flat.reshape(N, Cout, H, W)


def _reference(x_nchw, w1, b1, w2, b2):
    """Pure-JAX reference of DoubleConv (eval mode) for verification."""
    dn = ("NCHW", "OIHW", "NCHW")
    y = jax.lax.conv_general_dilated(x_nchw, w1, (1, 1), "SAME",
                                     dimension_numbers=dn)
    y = jax.nn.relu(y + b1[None, :, None, None])
    y = jax.lax.conv_general_dilated(y, w2, (1, 1), "SAME",
                                     dimension_numbers=dn)
    return jax.nn.relu(y + b2[None, :, None, None])


if __name__ == "__main__":
    # Shapes implied by DoubleConv(in_c=4, out_c=8) on a small image batch.
    N, Cin, Cout, H, W = 2, 4, 8, 16, 16

    key = jax.random.PRNGKey(0)
    kx, k1, kb1, k2, kb2 = jax.random.split(key, 5)
    x = jax.random.normal(kx, (N, Cin, H, W), dtype=jnp.float32)

    # Deterministic parameter init (shapes follow nn.Conv2d(in, out, 3)).
    fan1 = Cin * 9
    w1 = jax.random.uniform(k1, (Cout, Cin, 3, 3), jnp.float32,
                            -1.0 / jnp.sqrt(fan1), 1.0 / jnp.sqrt(fan1))
    b1 = jax.random.uniform(kb1, (Cout,), jnp.float32,
                            -1.0 / jnp.sqrt(fan1), 1.0 / jnp.sqrt(fan1))
    fan2 = Cout * 9
    w2 = jax.random.uniform(k2, (Cout, Cout, 3, 3), jnp.float32,
                            -1.0 / jnp.sqrt(fan2), 1.0 / jnp.sqrt(fan2))
    b2 = jax.random.uniform(kb2, (Cout,), jnp.float32,
                            -1.0 / jnp.sqrt(fan2), 1.0 / jnp.sqrt(fan2))

    # Parameter re-layout done ONCE (hoisted out of the forward pass).
    params = init_double_conv_params(w1, b1, w2, b2, H, W)

    out = double_conv(x, params)
    out = jax.block_until_ready(out)

    ref = _reference(x, w1, b1, w2, b2)
    assert out.shape == (N, Cout, H, W)
    assert jnp.allclose(out, ref, rtol=1e-3, atol=1e-3), "mismatch vs reference"

    print("KERNEL_OK")
</pallas_src>

<mosaic_0001>
module attributes {stable_mosaic.version = 11 : i64} {
  func.func @_double_conv_kernel(%arg0: i32, %arg1: memref<2x8x256xf32, #tpu.memory_space<vmem>>, %arg2: memref<8x72xf32, #tpu.memory_space<vmem>>, %arg3: memref<8x1xf32, #tpu.memory_space<vmem>>, %arg4: memref<8x72xf32, #tpu.memory_space<vmem>>, %arg5: memref<8x1xf32, #tpu.memory_space<vmem>>, %arg6: memref<9x512xf32, #tpu.memory_space<vmem>>, %arg7: memref<2x8x256xf32, #tpu.memory_space<vmem>>) attributes {dimension_semantics = [#tpu.dimension_semantics<parallel>], iteration_bounds = array<i64: 1>, scalar_prefetch = 0 : i64, scratch_operands = 0 : i64, tpu.core_type = #tpu.core_type<tc>, window_params = [{transform_indices = @transform_0, window_bounds = array<i64: 2, 8, 256>}, {pipeline_mode = #tpu.pipeline_mode<synchronous>, transform_indices = @transform_1, window_bounds = array<i64: 8, 72>}, {pipeline_mode = #tpu.pipeline_mode<synchronous>, transform_indices = @transform_2, window_bounds = array<i64: 8, 1>}, {pipeline_mode = #tpu.pipeline_mode<synchronous>, transform_indices = @transform_3, window_bounds = array<i64: 8, 72>}, {pipeline_mode = #tpu.pipeline_mode<synchronous>, transform_indices = @transform_4, window_bounds = array<i64: 8, 1>}, {pipeline_mode = #tpu.pipeline_mode<synchronous>, transform_indices = @transform_5, window_bounds = array<i64: 9, 512>}, {transform_indices = @transform_6, window_bounds = array<i64: 2, 8, 256>}]} {
    %c0 = arith.constant 0 : index
    %c0_0 = arith.constant 0 : index
    %c0_1 = arith.constant 0 : index
    %0 = vector.load %arg1[%c0, %c0_0, %c0_1] : memref<2x8x256xf32, #tpu.memory_space<vmem>>, vector<1x8x256xf32>
    %1 = vector.shape_cast %0 : vector<1x8x256xf32> to vector<8x256xf32>
    %c1 = arith.constant 1 : index
    %c0_2 = arith.constant 0 : index
    %c0_3 = arith.constant 0 : index
    %2 = vector.load %arg1[%c1, %c0_2, %c0_3] : memref<2x8x256xf32, #tpu.memory_space<vmem>>, vector<1x8x256xf32>
    %3 = vector.shape_cast %2 : vector<1x8x256xf32> to vector<8x256xf32>
    %4 = tpu.concatenate %1, %3 in 1 : vector<8x256xf32>, vector<8x256xf32> -> vector<8x512xf32>
    %c0_4 = arith.constant 0 : index
    %c0_5 = arith.constant 0 : index
    %5 = vector.load %arg6[%c0_4, %c0_5] : memref<9x512xf32, #tpu.memory_space<vmem>>, vector<9x512xf32>
    %c17_i32 = arith.constant 17 : i32
    %6 = tpu.dynamic_rotate %4 by %c17_i32 dim 1 : vector<8x512xf32>, i32 -> vector<8x512xf32>
    %7 = vector.extract_strided_slice %5 {offsets = [0, 0], sizes = [1, 512], strides = [1, 1]} : vector<9x512xf32> to vector<1x512xf32>
    %8 = vector.broadcast %7 : vector<1x512xf32> to vector<8x512xf32>
    %9 = arith.mulf %6, %8 : vector<8x512xf32>
    %c16_i32 = arith.constant 16 : i32
    %10 = tpu.dynamic_rotate %4 by %c16_i32 dim 1 : vector<8x512xf32>, i32 -> vector<8x512xf32>
    %11 = vector.extract_strided_slice %5 {offsets = [1, 0], sizes = [1, 512], strides = [1, 1]} : vector<9x512xf32> to vector<1x512xf32>
    %12 = vector.broadcast %11 : vector<1x512xf32> to vector<8x512xf32>
    %13 = arith.mulf %10, %12 : vector<8x512xf32>
    %c15_i32 = arith.constant 15 : i32
    %14 = tpu.dynamic_rotate %4 by %c15_i32 dim 1 : vector<8x512xf32>, i32 -> vector<8x512xf32>
    %15 = vector.extract_strided_slice %5 {offsets = [2, 0], sizes = [1, 512], strides = [1, 1]} : vector<9x512xf32> to vector<1x512xf32>
    %16 = vector.broadcast %15 : vector<1x512xf32> to vector<8x512xf32>
    %17 = arith.mulf %14, %16 : vector<8x512xf32>
    %c1_i32 = arith.constant 1 : i32
    %18 = tpu.dynamic_rotate %4 by %c1_i32 dim 1 : vector<8x512xf32>, i32 -> vector<8x512xf32>
    %19 = vector.extract_strided_slice %5 {offsets = [3, 0], sizes = [1, 512], strides = [1, 1]} : vector<9x512xf32> to vector<1x512xf32>
    %20 = vector.broadcast %19 : vector<1x512xf32> to vector<8x512xf32>
    %21 = arith.mulf %18, %20 : vector<8x512xf32>
    %c511_i32 = arith.constant 511 : i32
    %22 = tpu.dynamic_rotate %4 by %c511_i32 dim 1 : vector<8x512xf32>, i32 -> vector<8x512xf32>
    %23 = vector.extract_strided_slice %5 {offsets = [5, 0], sizes = [1, 512], strides = [1, 1]} : vector<9x512xf32> to vector<1x512xf32>
    %24 = vector.broadcast %23 : vector<1x512xf32> to vector<8x512xf32>
    %25 = arith.mulf %22, %24 : vector<8x512xf32>
    %c497_i32 = arith.constant 497 : i32
    %26 = tpu.dynamic_rotate %4 by %c497_i32 dim 1 : vector<8x512xf32>, i32 -> vector<8x512xf32>
    %27 = vector.extract_strided_slice %5 {offsets = [6, 0], sizes = [1, 512], strides = [1, 1]} : vector<9x512xf32> to vector<1x512xf32>
    %28 = vector.broadcast %27 : vector<1x512xf32> to vector<8x512xf32>
    %29 = arith.mulf %26, %28 : vector<8x512xf32>
    %c496_i32 = arith.constant 496 : i32
    %30 = tpu.dynamic_rotate %4 by %c496_i32 dim 1 : vector<8x512xf32>, i32 -> vector<8x512xf32>
    %31 = vector.extract_strided_slice %5 {offsets = [7, 0], sizes = [1, 512], strides = [1, 1]} : vector<9x512xf32> to vector<1x512xf32>
    %32 = vector.broadcast %31 : vector<1x512xf32> to vector<8x512xf32>
    %33 = arith.mulf %30, %32 : vector<8x512xf32>
    %c495_i32 = arith.constant 495 : i32
    %34 = tpu.dynamic_rotate %4 by %c495_i32 dim 1 : vector<8x512xf32>, i32 -> vector<8x512xf32>
    %35 = vector.extract_strided_slice %5 {offsets = [8, 0], sizes = [1, 512], strides = [1, 1]} : vector<9x512xf32> to vector<1x512xf32>
    %36 = vector.broadcast %35 : vector<1x512xf32> to vector<8x512xf32>
    %37 = arith.mulf %34, %36 : vector<8x512xf32>
    %38 = tpu.concatenate %9, %13, %17, %21, %4, %25, %29, %33, %37 in 0 : vector<8x512xf32>, vector<8x512xf32>, vector<8x512xf32>, vector<8x512xf32>, vector<8x512xf32>, vector<8x512xf32>, vector<8x512xf32>, vector<8x512xf32>, vector<8x512xf32> -> vector<72x512xf32>
    %c0_6 = arith.constant 0 : index
    %c0_7 = arith.constant 0 : index
    %39 = vector.load %arg2[%c0_6, %c0_7] : memref<8x72xf32, #tpu.memory_space<vmem>>, vector<8x72xf32>
    %cst = arith.constant dense<0.000000e+00> : vector<8x512xf32>
    %40 = tpu.matmul %39, %38, %cst {dimension_numbers = #tpu.dot_dimension_numbers<[1], [0], [0], [1], [0, 0, 1, 1], [], []>} : vector<8x72xf32>, vector<72x512xf32>, vector<8x512xf32> -> vector<8x512xf32>
    %c0_8 = arith.constant 0 : index
    %c0_9 = arith.constant 0 : index
    %41 = vector.load %arg3[%c0_8, %c0_9] : memref<8x1xf32, #tpu.memory_space<vmem>>, vector<8x1xf32>
    %42 = vector.broadcast %41 : vector<8x1xf32> to vector<8x512xf32>
    %43 = arith.addf %40, %42 : vector<8x512xf32>
    %cst_10 = arith.constant 0.000000e+00 : f32
    %44 = vector.broadcast %cst_10 : f32 to vector<8x512xf32>
    %45 = arith.maximumf %43, %44 : vector<8x512xf32>
    %c17_i32_11 = arith.constant 17 : i32
    %46 = tpu.dynamic_rotate %45 by %c17_i32_11 dim 1 : vector<8x512xf32>, i32 -> vector<8x512xf32>
    %47 = vector.extract_strided_slice %5 {offsets = [0, 0], sizes = [1, 512], strides = [1, 1]} : vector<9x512xf32> to vector<1x512xf32>
    %48 = vector.broadcast %47 : vector<1x512xf32> to vector<8x512xf32>
    %49 = arith.mulf %46, %48 : vector<8x512xf32>
    %c16_i32_12 = arith.constant 16 : i32
    %50 = tpu.dynamic_rotate %45 by %c16_i32_12 dim 1 : vector<8x512xf32>, i32 -> vector<8x512xf32>
    %51 = vector.extract_strided_slice %5 {offsets = [1, 0], sizes = [1, 512], strides = [1, 1]} : vector<9x512xf32> to vector<1x512xf32>
    %52 = vector.broadcast %51 : vector<1x512xf32> to vector<8x512xf32>
    %53 = arith.mulf %50, %52 : vector<8x512xf32>
    %c15_i32_13 = arith.constant 15 : i32
    %54 = tpu.dynamic_rotate %45 by %c15_i32_13 dim 1 : vector<8x512xf32>, i32 -> vector<8x512xf32>
    %55 = vector.extract_strided_slice %5 {offsets = [2, 0], sizes = [1, 512], strides = [1, 1]} : vector<9x512xf32> to vector<1x512xf32>
    %56 = vector.broadcast %55 : vector<1x512xf32> to vector<8x512xf32>
    %57 = arith.mulf %54, %56 : vector<8x512xf32>
    %c1_i32_14 = arith.constant 1 : i32
    %58 = tpu.dynamic_rotate %45 by %c1_i32_14 dim 1 : vector<8x512xf32>, i32 -> vector<8x512xf32>
    %59 = vector.extract_strided_slice %5 {offsets = [3, 0], sizes = [1, 512], strides = [1, 1]} : vector<9x512xf32> to vector<1x512xf32>
    %60 = vector.broadcast %59 : vector<1x512xf32> to vector<8x512xf32>
    %61 = arith.mulf %58, %60 : vector<8x512xf32>
    %c511_i32_15 = arith.constant 511 : i32
    %62 = tpu.dynamic_rotate %45 by %c511_i32_15 dim 1 : vector<8x512xf32>, i32 -> vector<8x512xf32>
    %63 = vector.extract_strided_slice %5 {offsets = [5, 0], sizes = [1, 512], strides = [1, 1]} : vector<9x512xf32> to vector<1x512xf32>
    %64 = vector.broadcast %63 : vector<1x512xf32> to vector<8x512xf32>
    %65 = arith.mulf %62, %64 : vector<8x512xf32>
    %c497_i32_16 = arith.constant 497 : i32
    %66 = tpu.dynamic_rotate %45 by %c497_i32_16 dim 1 : vector<8x512xf32>, i32 -> vector<8x512xf32>
    %67 = vector.extract_strided_slice %5 {offsets = [6, 0], sizes = [1, 512], strides = [1, 1]} : vector<9x512xf32> to vector<1x512xf32>
    %68 = vector.broadcast %67 : vector<1x512xf32> to vector<8x512xf32>
    %69 = arith.mulf %66, %68 : vector<8x512xf32>
    %c496_i32_17 = arith.constant 496 : i32
    %70 = tpu.dynamic_rotate %45 by %c496_i32_17 dim 1 : vector<8x512xf32>, i32 -> vector<8x512xf32>
    %71 = vector.extract_strided_slice %5 {offsets = [7, 0], sizes = [1, 512], strides = [1, 1]} : vector<9x512xf32> to vector<1x512xf32>
    %72 = vector.broadcast %71 : vector<1x512xf32> to vector<8x512xf32>
    %73 = arith.mulf %70, %72 : vector<8x512xf32>
    %c495_i32_18 = arith.constant 495 : i32
    %74 = tpu.dynamic_rotate %45 by %c495_i32_18 dim 1 : vector<8x512xf32>, i32 -> vector<8x512xf32>
    %75 = vector.extract_strided_slice %5 {offsets = [8, 0], sizes = [1, 512], strides = [1, 1]} : vector<9x512xf32> to vector<1x512xf32>
    %76 = vector.broadcast %75 : vector<1x512xf32> to vector<8x512xf32>
    %77 = arith.mulf %74, %76 : vector<8x512xf32>
    %78 = tpu.concatenate %49, %53, %57, %61, %45, %65, %69, %73, %77 in 0 : vector<8x512xf32>, vector<8x512xf32>, vector<8x512xf32>, vector<8x512xf32>, vector<8x512xf32>, vector<8x512xf32>, vector<8x512xf32>, vector<8x512xf32>, vector<8x512xf32> -> vector<72x512xf32>
    %c0_19 = arith.constant 0 : index
    %c0_20 = arith.constant 0 : index
    %79 = vector.load %arg4[%c0_19, %c0_20] : memref<8x72xf32, #tpu.memory_space<vmem>>, vector<8x72xf32>
    %cst_21 = arith.constant dense<0.000000e+00> : vector<8x512xf32>
    %80 = tpu.matmul %79, %78, %cst_21 {dimension_numbers = #tpu.dot_dimension_numbers<[1], [0], [0], [1], [0, 0, 1, 1], [], []>} : vector<8x72xf32>, vector<72x512xf32>, vector<8x512xf32> -> vector<8x512xf32>
    %c0_22 = arith.constant 0 : index
    %c0_23 = arith.constant 0 : index
    %81 = vector.load %arg5[%c0_22, %c0_23] : memref<8x1xf32, #tpu.memory_space<vmem>>, vector<8x1xf32>
    %82 = vector.broadcast %81 : vector<8x1xf32> to vector<8x512xf32>
    %83 = arith.addf %80, %82 : vector<8x512xf32>
    %cst_24 = arith.constant 0.000000e+00 : f32
    %84 = vector.broadcast %cst_24 : f32 to vector<8x512xf32>
    %85 = arith.maximumf %83, %84 : vector<8x512xf32>
    %86 = vector.extract_strided_slice %85 {offsets = [0, 0], sizes = [8, 256], strides = [1, 1]} : vector<8x512xf32> to vector<8x256xf32>
    %c0_25 = arith.constant 0 : index
    %c0_26 = arith.constant 0 : index
    %c0_27 = arith.constant 0 : index
    %87 = vector.load %arg7[%c0_25, %c0_26, %c0_27] : memref<2x8x256xf32, #tpu.memory_space<vmem>>, vector<1x8x256xf32>
    %88 = vector.shape_cast %87 : vector<1x8x256xf32> to vector<8x256xf32>
    %89 = vector.shape_cast %86 : vector<8x256xf32> to vector<1x8x256xf32>
    tpu.vector_store %arg7[%c0_25, %c0_26, %c0_27], %89 {strides = array<i32>} : memref<2x8x256xf32, #tpu.memory_space<vmem>>, vector<1x8x256xf32>,
    %90 = vector.extract_strided_slice %85 {offsets = [0, 256], sizes = [8, 256], strides = [1, 1]} : vector<8x512xf32> to vector<8x256xf32>
    %c1_28 = arith.constant 1 : index
    %c0_29 = arith.constant 0 : index
    %c0_30 = arith.constant 0 : index
    %91 = vector.load %arg7[%c1_28, %c0_29, %c0_30] : memref<2x8x256xf32, #tpu.memory_space<vmem>>, vector<1x8x256xf32>
    %92 = vector.shape_cast %91 : vector<1x8x256xf32> to vector<8x256xf32>
    %93 = vector.shape_cast %90 : vector<8x256xf32> to vector<1x8x256xf32>
    tpu.vector_store %arg7[%c1_28, %c0_29, %c0_30], %93 {strides = array<i32>} : memref<2x8x256xf32, #tpu.memory_space<vmem>>, vector<1x8x256xf32>,
    return
  }
  func.func @transform_0(%arg0: i32) -> (i32, i32, i32) {
    %c0_i32 = arith.constant 0 : i32
    %c0_i32_0 = arith.constant 0 : i32
    %c0_i32_1 = arith.constant 0 : i32
    return %arg0, %c0_i32, %c0_i32_0 : i32, i32, i32
  }
  func.func @transform_1(%arg0: i32) -> (i32, i32) {
    %c0_i32 = arith.constant 0 : i32
    %c0_i32_0 = arith.constant 0 : i32
    %c0_i32_1 = arith.constant 0 : i32
    return %c0_i32, %c0_i32_0 : i32, i32
  }
  func.func @transform_2(%arg0: i32) -> (i32, i32) {
    %c0_i32 = arith.constant 0 : i32
    %c0_i32_0 = arith.constant 0 : i32
    %c0_i32_1 = arith.constant 0 : i32
    return %c0_i32, %c0_i32_0 : i32, i32
  }
  func.func @transform_3(%arg0: i32) -> (i32, i32) {
    %c0_i32 = arith.constant 0 : i32
    %c0_i32_0 = arith.constant 0 : i32
    %c0_i32_1 = arith.constant 0 : i32
    return %c0_i32, %c0_i32_0 : i32, i32
  }
  func.func @transform_4(%arg0: i32) -> (i32, i32) {
    %c0_i32 = arith.constant 0 : i32
    %c0_i32_0 = arith.constant 0 : i32
    %c0_i32_1 = arith.constant 0 : i32
    return %c0_i32, %c0_i32_0 : i32, i32
  }
  func.func @transform_5(%arg0: i32) -> (i32, i32) {
    %c0_i32 = arith.constant 0 : i32
    %c0_i32_0 = arith.constant 0 : i32
    %c0_i32_1 = arith.constant 0 : i32
    return %c0_i32, %c0_i32_0 : i32, i32
  }
  func.func @transform_6(%arg0: i32) -> (i32, i32, i32) {
    %c0_i32 = arith.constant 0 : i32
    %c0_i32_0 = arith.constant 0 : i32
    %c0_i32_1 = arith.constant 0 : i32
    return %arg0, %c0_i32, %c0_i32_0 : i32, i32, i32
  }
}

</mosaic_0001>

<llo_original>
// kernel: double_conv.1
$region0: #{double_conv.1}
  #allocation0 [shape = 'u32[]', space=smem, size = 0x4, offset = 0x4, fixed_abs, tag = 'smem constant byte address 0x4 - core index']
  #allocation1 [shape = 'u32[72,128]{1,0:T(1,128)}', space=vmem, size = 0x9000, scoped, tag = 'internal scratch']
  %s0 = inlined_call_operand.vmem [shape: f32[2,8,256], index: 0, kind: input, shape index: {}]
  %s1 = inlined_call_operand.vmem [shape: f32[8,72], index: 1, kind: input, shape index: {}]
  %s2 = inlined_call_operand.vmem [shape: f32[8,1], index: 2, kind: input, shape index: {}]
  %s3 = inlined_call_operand.vmem [shape: f32[8,72], index: 3, kind: input, shape index: {}]
  %s4 = inlined_call_operand.vmem [shape: f32[8,1], index: 4, kind: input, shape index: {}]
  %s5 = inlined_call_operand.vmem [shape: f32[9,512], index: 5, kind: input, shape index: {}]
  %s6 = inlined_call_operand.vmem [shape: f32[2,8,256], index: 6, kind: output, shape index: {}]
  %s7 = sld [smem:[#allocation0]]
  $region34: #{double_conv.1} parent=0
    _
  %s9 = ssub.s32 1, %s7
  %s10 = scalar_select 0, %s9, %s7
  // Predicated region
  $region2: #{double_conv.1} parent=0 // pred_check
    _
  $region3: #{double_conv.1} parent=0 // pred_check_branch
    %12 = sbr.rel (0) target = $region5
  $region4: #{double_conv.1} parent=0 // pred_region
    _
  $region5: #{double_conv.1} parent=0 // pred_fallthru
    _
  // Predicated region
  $region6: #{double_conv.1} parent=0 // pred_check
    _
  $region7: #{double_conv.1} parent=0 // pred_check_branch
    %14 = sbr.rel (0) target = $region9
  $region8: #{double_conv.1} parent=0 // pred_region
    _
  $region9: #{double_conv.1} parent=0 // pred_fallthru
    _
  // Predicated region
  $region10: #{double_conv.1} parent=0 // pred_check
    _
  $region11: #{double_conv.1} parent=0 // pred_check_branch
    %16 = sbr.rel (0) target = $region13
  $region12: #{double_conv.1} parent=0 // pred_region
    _
  $region13: #{double_conv.1} parent=0 // pred_fallthru
    _
  // Predicated region
  $region14: #{double_conv.1} parent=0 // pred_check
    _
  $region15: #{double_conv.1} parent=0 // pred_check_branch
    %18 = sbr.rel (0) target = $region17
  $region16: #{double_conv.1} parent=0 // pred_region
    _
  $region17: #{double_conv.1} parent=0 // pred_fallthru
    _
  // Predicated region
  $region18: #{double_conv.1} parent=0 // pred_check
    _
  $region19: #{double_conv.1} parent=0 // pred_check_branch
    %20 = sbr.rel (0) target = $region21
  $region20: #{double_conv.1} parent=0 // pred_region
    _
  $region21: #{double_conv.1} parent=0 // pred_fallthru
    _
  // Predicated region
  $region22: #{double_conv.1} parent=0 // pred_check
    _
  $region23: #{double_conv.1} parent=0 // pred_check_branch
    %22 = sbr.rel (0) target = $region25
  $region24: #{double_conv.1} parent=0 // pred_region
    _
  $region25: #{double_conv.1} parent=0 // pred_fallthru
    _
  %v23 = vld [vmem:[%s0] sm:$0xff]
  %v24 = vld [vmem:[%s0 + $0x8] sm:$0xff]
  %s25 = scalar_lea.vmem %s0, 16
  %v26 = vld [vmem:[%s25] sm:$0xff]
  %v27 = vld [vmem:[%s25 + $0x8] sm:$0xff]
  %v28 = vld [vmem:[%s5] sm:$0xff]
  %v29 = vld [vmem:[%s5 + $0x8] sm:$0xff]
  %v30 = vld [vmem:[%s5 + $0x10] sm:$0xff]
  %v31 = vld [vmem:[%s5 + $0x18] sm:$0xff]
  %v32 = vld [vmem:[%s5 + $0x20] sm:$0x1]
  %v33 = vld [vmem:[%s5 + $0x28] sm:$0x1]
  %v34 = vld [vmem:[%s5 + $0x30] sm:$0x1]
  %v35 = vld [vmem:[%s5 + $0x38] sm:$0x1]
  %36 = vrot.lane.b32.xlu0 %v23, 17
  %v37 = vpop.permute.xlu0 %36
  %38 = vrot.lane.b32.xlu0 %v24, 17
  %v39 = vpop.permute.xlu0 %38
  %40 = vrot.lane.b32.xlu0 %v26, 17
  %v41 = vpop.permute.xlu0 %40
  %42 = vrot.lane.b32.xlu0 %v27, 17
  %v43 = vpop.permute.xlu0 %42
  %v44 = vlaneseq
  %v45 = vand.u32 %v44, 127
  %vm46 = vcmp.lt.s32.totalorder %v45, 17
  %v47 = vsel %vm46, %v41, %v43
  %v48 = vsel %vm46, %v39, %v41
  %v49 = vsel %vm46, %v37, %v39
  %v50 = vsel %vm46, %v43, %v37
  %v51 = vperm.slane %v28, 0
  %v52 = vperm.slane %v29, 0
  %v53 = vperm.slane %v30, 0
  %v54 = vperm.slane %v31, 0
  %v55 = vmul.f32 %v50, %v51
  %v56 = vmul.f32 %v49, %v52
  %v57 = vmul.f32 %v48, %v53
  %v58 = vmul.f32 %v47, %v54
  %59 = vrot.lane.b32.xlu0 %v23, 16
  %v60 = vpop.permute.xlu0 %59
  %61 = vrot.lane.b32.xlu0 %v24, 16
  %v62 = vpop.permute.xlu0 %61
  %63 = vrot.lane.b32.xlu0 %v26, 16
  %v64 = vpop.permute.xlu0 %63
  %65 = vrot.lane.b32.xlu0 %v27, 16
  %v66 = vpop.permute.xlu0 %65
  %vm67 = vcmp.lt.s32.totalorder %v45, 16
  %v68 = vsel %vm67, %v64, %v66
  %v69 = vsel %vm67, %v62, %v64
  %v70 = vsel %vm67, %v60, %v62
  %v71 = vsel %vm67, %v66, %v60
  %v72 = vperm.slane %v28, 1
  %v73 = vperm.slane %v29, 1
  %v74 = vperm.slane %v30, 1
  %v75 = vperm.slane %v31, 1
  %v76 = vmul.f32 %v71, %v72
  %v77 = vmul.f32 %v70, %v73
  %v78 = vmul.f32 %v69, %v74
  %v79 = vmul.f32 %v68, %v75
  %80 = vrot.lane.b32.xlu0 %v23, 15
  %v81 = vpop.permute.xlu0 %80
  %82 = vrot.lane.b32.xlu0 %v24, 15
  %v83 = vpop.permute.xlu0 %82
  %84 = vrot.lane.b32.xlu0 %v26, 15
  %v85 = vpop.permute.xlu0 %84
  %86 = vrot.lane.b32.xlu0 %v27, 15
  %v87 = vpop.permute.xlu0 %86
  %vm88 = vcmp.lt.s32.totalorder %v45, 15
  %v89 = vsel %vm88, %v85, %v87
  %v90 = vsel %vm88, %v83, %v85
  %v91 = vsel %vm88, %v81, %v83
  %v92 = vsel %vm88, %v87, %v81
  %v93 = vperm.slane %v28, 2
  %v94 = vperm.slane %v29, 2
  %v95 = vperm.slane %v30, 2
  %v96 = vperm.slane %v31, 2
  %v97 = vmul.f32 %v92, %v93
  %v98 = vmul.f32 %v91, %v94
  %v99 = vmul.f32 %v90, %v95
  %v100 = vmul.f32 %v89, %v96
  %101 = vrot.lane.b32.xlu0 %v23, 1
  %v102 = vpop.permute.xlu0 %101
  %103 = vrot.lane.b32.xlu0 %v24, 1
  %v104 = vpop.permute.xlu0 %103
  %105 = vrot.lane.b32.xlu0 %v26, 1
  %v106 = vpop.permute.xlu0 %105
  %107 = vrot.lane.b32.xlu0 %v27, 1
  %v108 = vpop.permute.xlu0 %107
  %vm109 = vcmp.lt.s32.totalorder %v45, 1
  %v110 = vsel %vm109, %v106, %v108
  %v111 = vsel %vm109, %v104, %v106
  %v112 = vsel %vm109, %v102, %v104
  %v113 = vsel %vm109, %v108, %v102
  %v114 = vperm.slane %v28, 3
  %v115 = vperm.slane %v29, 3
  %v116 = vperm.slane %v30, 3
  %v117 = vperm.slane %v31, 3
  %v118 = vmul.f32 %v113, %v114
  %v119 = vmul.f32 %v112, %v115
  %v120 = vmul.f32 %v111, %v116
  %v121 = vmul.f32 %v110, %v117
  %122 = vrot.lane.b32.xlu0 %v23, 127
  %v123 = vpop.permute.xlu0 %122
  %124 = vrot.lane.b32.xlu0 %v24, 127
  %v125 = vpop.permute.xlu0 %124
  %126 = vrot.lane.b32.xlu0 %v26, 127
  %v127 = vpop.permute.xlu0 %126
  %128 = vrot.lane.b32.xlu0 %v27, 127
  %v129 = vpop.permute.xlu0 %128
  %vm130 = vcmp.lt.s32.totalorder %v45, 127
  %v131 = vsel %vm130, %v127, %v129
  %v132 = vsel %vm130, %v125, %v127
  %v133 = vsel %vm130, %v123, %v125
  %v134 = vsel %vm130, %v129, %v123
  %v135 = vperm.slane %v28, 5
  %v136 = vperm.slane %v29, 5
  %v137 = vperm.slane %v30, 5
  %v138 = vperm.slane %v31, 5
  %v139 = vmul.f32 %v133, %v135
  %v140 = vmul.f32 %v132, %v136
  %v141 = vmul.f32 %v131, %v137
  %v142 = vmul.f32 %v134, %v138
  %143 = vrot.lane.b32.xlu0 %v23, 113
  %v144 = vpop.permute.xlu0 %143
  %145 = vrot.lane.b32.xlu0 %v24, 113
  %v146 = vpop.permute.xlu0 %145
  %147 = vrot.lane.b32.xlu0 %v26, 113
  %v148 = vpop.permute.xlu0 %147
  %149 = vrot.lane.b32.xlu0 %v27, 113
  %v150 = vpop.permute.xlu0 %149
  %vm151 = vcmp.lt.s32.totalorder %v45, 113
  %v152 = vsel %vm151, %v148, %v150
  %v153 = vsel %vm151, %v146, %v148
  %v154 = vsel %vm151, %v144, %v146
  %v155 = vsel %vm151, %v150, %v144
  %v156 = vperm.slane %v28, 6
  %v157 = vperm.slane %v29, 6
  %v158 = vperm.slane %v30, 6
  %v159 = vperm.slane %v31, 6
  %v160 = vmul.f32 %v154, %v156
  %v161 = vmul.f32 %v153, %v157
  %v162 = vmul.f32 %v152, %v158
  %v163 = vmul.f32 %v155, %v159
  %164 = vrot.lane.b32.xlu0 %v23, 112
  %v165 = vpop.permute.xlu0 %164
  %166 = vrot.lane.b32.xlu0 %v24, 112
  %v167 = vpop.permute.xlu0 %166
  %168 = vrot.lane.b32.xlu0 %v26, 112
  %v169 = vpop.permute.xlu0 %168
  %170 = vrot.lane.b32.xlu0 %v27, 112
  %v171 = vpop.permute.xlu0 %170
  %vm172 = vcmp.lt.s32.totalorder %v45, 112
  %v173 = vsel %vm172, %v169, %v171
  %v174 = vsel %vm172, %v167, %v169
  %v175 = vsel %vm172, %v165, %v167
  %v176 = vsel %vm172, %v171, %v165
  %v177 = vperm.slane %v28, 7
  %v178 = vperm.slane %v29, 7
  %v179 = vperm.slane %v30, 7
  %v180 = vperm.slane %v31, 7
  %v181 = vmul.f32 %v175, %v177
  %v182 = vmul.f32 %v174, %v178
  %v183 = vmul.f32 %v173, %v179
  %v184 = vmul.f32 %v176, %v180
  %185 = vrot.lane.b32.xlu0 %v23, 111
  %v186 = vpop.permute.xlu0 %185
  %187 = vrot.lane.b32.xlu0 %v24, 111
  %v188 = vpop.permute.xlu0 %187
  %189 = vrot.lane.b32.xlu0 %v26, 111
  %v190 = vpop.permute.xlu0 %189
  %191 = vrot.lane.b32.xlu0 %v27, 111
  %v192 = vpop.permute.xlu0 %191
  %vm193 = vcmp.lt.s32.totalorder %v45, 111
  %v194 = vsel %vm193, %v190, %v192
  %v195 = vsel %vm193, %v188, %v190
  %v196 = vsel %vm193, %v186, %v188
  %v197 = vsel %vm193, %v192, %v186
  %v198 = vperm.slane %v32, 0
  %v199 = vperm.slane %v33, 0
  %v200 = vperm.slane %v34, 0
  %v201 = vperm.slane %v35, 0
  %v202 = vmul.f32 %v196, %v198
  %v203 = vmul.f32 %v195, %v199
  %v204 = vmul.f32 %v194, %v200
  %v205 = vmul.f32 %v197, %v201
  %v206 = vld [vmem:[%s1] sm:$0xff]
  %v207 = vld [vmem:[%s2] sm:$0xff]
  %209 = vset.pattern.permute.xlu0 0
  %210 = vperm.xlu0 %209, %v207
  %v211 = vpop.permute.xlu0 %210
  %vm213 = vcmask 588800
  %v215 = vsel %vm213, %v206, 0
  %217 = vmatpush.msra.mxu0 0.0
  %218 = vmatpush.msra.mxu0 0.0
  %219 = vmatpush.msra.mxu0 0.0
  %220 = vmatpush.msra.mxu0 0.0
  %221 = vmatpush.msra.mxu0 0.0
  %222 = vmatpush.msra.mxu0 0.0
  %223 = vmatpush.msra.mxu0 0.0
  %224 = vmatpush.msra.mxu0 %v202
  %225 = vmatpush.msra.mxu0 %v181
  %226 = vmatpush.msra.mxu0 %v160
  %227 = vmatpush.msra.mxu0 %v139
  %228 = vmatpush.msra.mxu0 %v23
  %229 = vmatpush.msra.mxu0 %v118
  %230 = vmatpush.msra.mxu0 %v97
  %231 = vmatpush.msra.mxu0 %v76
  %232 = vmatpush.msra.mxu0 %v55
  %233 = vmatmul.f32.gmra.mxu0 %v215
  %v234 = vpop.f32.mrf.mxu0
  %v235 = vadd.f32 %v211, %v234
  %236 = vdwg.mxu0
  %237 = vmatpush.msra.mxu0 0.0
  %238 = vmatpush.msra.mxu0 0.0
  %239 = vmatpush.msra.mxu0 0.0
  %240 = vmatpush.msra.mxu0 0.0
  %241 = vmatpush.msra.mxu0 0.0
  %242 = vmatpush.msra.mxu0 0.0
  %243 = vmatpush.msra.mxu0 0.0
  %244 = vmatpush.msra.mxu0 %v203
  %245 = vmatpush.msra.mxu0 %v182
  %246 = vmatpush.msra.mxu0 %v161
  %247 = vmatpush.msra.mxu0 %v140
  %248 = vmatpush.msra.mxu0 %v24
  %249 = vmatpush.msra.mxu0 %v119
  %250 = vmatpush.msra.mxu0 %v98
  %251 = vmatpush.msra.mxu0 %v77
  %252 = vmatpush.msra.mxu0 %v56
  %253 = vmatmul.f32.gmra.mxu0 %v215
  %v254 = vpop.f32.mrf.mxu0
  %v255 = vadd.f32 %v211, %v254
  %256 = vdwg.mxu0
  %257 = vmatpush.msra.mxu0 0.0
  %258 = vmatpush.msra.mxu0 0.0
  %259 = vmatpush.msra.mxu0 0.0
  %260 = vmatpush.msra.mxu0 0.0
  %261 = vmatpush.msra.mxu0 0.0
  %262 = vmatpush.msra.mxu0 0.0
  %263 = vmatpush.msra.mxu0 0.0
  %264 = vmatpush.msra.mxu0 %v204
  %265 = vmatpush.msra.mxu0 %v183
  %266 = vmatpush.msra.mxu0 %v162
  %267 = vmatpush.msra.mxu0 %v141
  %268 = vmatpush.msra.mxu0 %v26
  %269 = vmatpush.msra.mxu0 %v120
  %270 = vmatpush.msra.mxu0 %v99
  %271 = vmatpush.msra.mxu0 %v78
  %272 = vmatpush.msra.mxu0 %v57
  %273 = vmatmul.f32.gmra.mxu0 %v215
  %v274 = vpop.f32.mrf.mxu0
  %v275 = vadd.f32 %v211, %v274
  %276 = vdwg.mxu0
  %277 = vmatpush.msra.mxu0 0.0
  %278 = vmatpush.msra.mxu0 0.0
  %279 = vmatpush.msra.mxu0 0.0
  %280 = vmatpush.msra.mxu0 0.0
  %281 = vmatpush.msra.mxu0 0.0
  %282 = vmatpush.msra.mxu0 0.0
  %283 = vmatpush.msra.mxu0 0.0
  %284 = vmatpush.msra.mxu0 %v205
  %285 = vmatpush.msra.mxu0 %v184
  %286 = vmatpush.msra.mxu0 %v163
  %287 = vmatpush.msra.mxu0 %v142
  %288 = vmatpush.msra.mxu0 %v27
  %289 = vmatpush.msra.mxu0 %v121
  %290 = vmatpush.msra.mxu0 %v100
  %291 = vmatpush.msra.mxu0 %v79
  %292 = vmatpush.msra.mxu0 %v58
  %293 = vmatmul.f32.gmra.mxu0 %v215
  %v294 = vpop.f32.mrf.mxu0
  %v295 = vadd.f32 %v211, %v294
  %296 = vdwg.mxu0
  %v297 = vmax.f32 %v235, 0.0
  %v298 = vmax.f32 %v255, 0.0
  %v299 = vmax.f32 %v275, 0.0
  %v300 = vmax.f32 %v295, 0.0
  %301 = vrot.lane.b32.xlu0 %v297, 17
  %v302 = vpop.permute.xlu0 %301
  %303 = vrot.lane.b32.xlu0 %v298, 17
  %v304 = vpop.permute.xlu0 %303
  %305 = vrot.lane.b32.xlu0 %v299, 17
  %v306 = vpop.permute.xlu0 %305
  %307 = vrot.lane.b32.xlu0 %v300, 17
  %v308 = vpop.permute.xlu0 %307
  %v309 = vsel %vm46, %v306, %v308
  %v310 = vsel %vm46, %v304, %v306
  %v311 = vsel %vm46, %v302, %v304
  %v312 = vsel %vm46, %v308, %v302
  %v313 = vmul.f32 %v312, %v51
  %v314 = vmul.f32 %v311, %v52
  %v315 = vmul.f32 %v310, %v53
  %v316 = vmul.f32 %v309, %v54
  %317 = vrot.lane.b32.xlu0 %v297, 16
  %v318 = vpop.permute.xlu0 %317
  %319 = vrot.lane.b32.xlu0 %v298, 16
  %v320 = vpop.permute.xlu0 %319
  %321 = vrot.lane.b32.xlu0 %v299, 16
  %v322 = vpop.permute.xlu0 %321
  %323 = vrot.lane.b32.xlu0 %v300, 16
  %v324 = vpop.permute.xlu0 %323
  %v325 = vsel %vm67, %v322, %v324
  %v326 = vsel %vm67, %v320, %v322
  %v327 = vsel %vm67, %v318, %v320
  %v328 = vsel %vm67, %v324, %v318
  %v329 = vmul.f32 %v328, %v72
  %v330 = vmul.f32 %v327, %v73
  %v331 = vmul.f32 %v326, %v74
  %v332 = vmul.f32 %v325, %v75
  %333 = vrot.lane.b32.xlu0 %v297, 15
  %v334 = vpop.permute.xlu0 %333
  %335 = vrot.lane.b32.xlu0 %v298, 15
  %v336 = vpop.permute.xlu0 %335
  %337 = vrot.lane.b32.xlu0 %v299, 15
  %v338 = vpop.permute.xlu0 %337
  %339 = vrot.lane.b32.xlu0 %v300, 15
  %v340 = vpop.permute.xlu0 %339
  %v341 = vsel %vm88, %v338, %v340
  %v342 = vsel %vm88, %v336, %v338
  %v343 = vsel %vm88, %v334, %v336
  %v344 = vsel %vm88, %v340, %v334
  %v345 = vmul.f32 %v344, %v93
  %v346 = vmul.f32 %v343, %v94
  %v347 = vmul.f32 %v342, %v95
  %v348 = vmul.f32 %v341, %v96
  %349 = vrot.lane.b32.xlu0 %v297, 1
  %v350 = vpop.permute.xlu0 %349
  %351 = vrot.lane.b32.xlu0 %v298, 1
  %v352 = vpop.permute.xlu0 %351
  %353 = vrot.lane.b32.xlu0 %v299, 1
  %v354 = vpop.permute.xlu0 %353
  %355 = vrot.lane.b32.xlu0 %v300, 1
  %v356 = vpop.permute.xlu0 %355
  %v357 = vsel %vm109, %v354, %v356
  %v358 = vsel %vm109, %v352, %v354
  %v359 = vsel %vm109, %v350, %v352
  %v360 = vsel %vm109, %v356, %v350
  %v361 = vmul.f32 %v360, %v114
  %v362 = vmul.f32 %v359, %v115
  %v363 = vmul.f32 %v358, %v116
  %v364 = vmul.f32 %v357, %v117
  %365 = vrot.lane.b32.xlu0 %v297, 127
  %v366 = vpop.permute.xlu0 %365
  %367 = vrot.lane.b32.xlu0 %v298, 127
  %v368 = vpop.permute.xlu0 %367
  %369 = vrot.lane.b32.xlu0 %v299, 127
  %v370 = vpop.permute.xlu0 %369
  %371 = vrot.lane.b32.xlu0 %v300, 127
  %v372 = vpop.permute.xlu0 %371
  %v373 = vsel %vm130, %v370, %v372
  %v374 = vsel %vm130, %v368, %v370
  %v375 = vsel %vm130, %v366, %v368
  %v376 = vsel %vm130, %v372, %v366
  %v377 = vmul.f32 %v375, %v135
  %v378 = vmul.f32 %v374, %v136
  %v379 = vmul.f32 %v373, %v137
  %v380 = vmul.f32 %v376, %v138
  %381 = vrot.lane.b32.xlu0 %v297, 113
  %v382 = vpop.permute.xlu0 %381
  %383 = vrot.lane.b32.xlu0 %v298, 113
  %v384 = vpop.permute.xlu0 %383
  %385 = vrot.lane.b32.xlu0 %v299, 113
  %v386 = vpop.permute.xlu0 %385
  %387 = vrot.lane.b32.xlu0 %v300, 113
  %v388 = vpop.permute.xlu0 %387
  %v389 = vsel %vm151, %v386, %v388
  %v390 = vsel %vm151, %v384, %v386
  %v391 = vsel %vm151, %v382, %v384
  %v392 = vsel %vm151, %v388, %v382
  %v393 = vmul.f32 %v391, %v156
  %v394 = vmul.f32 %v390, %v157
  %v395 = vmul.f32 %v389, %v158
  %v396 = vmul.f32 %v392, %v159
  %397 = vrot.lane.b32.xlu0 %v297, 112
  %v398 = vpop.permute.xlu0 %397
  %399 = vrot.lane.b32.xlu0 %v298, 112
  %v400 = vpop.permute.xlu0 %399
  %401 = vrot.lane.b32.xlu0 %v299, 112
  %v402 = vpop.permute.xlu0 %401
  %403 = vrot.lane.b32.xlu0 %v300, 112
  %v404 = vpop.permute.xlu0 %403
  %v405 = vsel %vm172, %v402, %v404
  %v406 = vsel %vm172, %v400, %v402
  %v407 = vsel %vm172, %v398, %v400
  %v408 = vsel %vm172, %v404, %v398
  %v409 = vmul.f32 %v407, %v177
  %v410 = vmul.f32 %v406, %v178
  %v411 = vmul.f32 %v405, %v179
  %v412 = vmul.f32 %v408, %v180
  %413 = vrot.lane.b32.xlu0 %v297, 111
  %v414 = vpop.permute.xlu0 %413
  %415 = vrot.lane.b32.xlu0 %v298, 111
  %v416 = vpop.permute.xlu0 %415
  %417 = vrot.lane.b32.xlu0 %v299, 111
  %v418 = vpop.permute.xlu0 %417
  %419 = vrot.lane.b32.xlu0 %v300, 111
  %v420 = vpop.permute.xlu0 %419
  %v421 = vsel %vm193, %v418, %v420
  %v422 = vsel %vm193, %v416, %v418
  %v423 = vsel %vm193, %v414, %v416
  %v424 = vsel %vm193, %v420, %v414
  %v425 = vmul.f32 %v423, %v198
  %v426 = vmul.f32 %v422, %v199
  %v427 = vmul.f32 %v421, %v200
  %v428 = vmul.f32 %v424, %v201
  %v429 = vld [vmem:[%s3] sm:$0xff]
  %v430 = vld [vmem:[%s4] sm:$0xff]
  %432 = vset.pattern.permute.xlu0 0
  %433 = vperm.xlu0 %432, %v430
  %v434 = vpop.permute.xlu0 %433
  %v437 = vsel %vm213, %v429, 0
  %439 = vmatpush.msra.mxu0 0.0
  %440 = vmatpush.msra.mxu0 0.0
  %441 = vmatpush.msra.mxu0 0.0
  %442 = vmatpush.msra.mxu0 0.0
  %443 = vmatpush.msra.mxu0 0.0
  %444 = vmatpush.msra.mxu0 0.0
  %445 = vmatpush.msra.mxu0 0.0
  %446 = vmatpush.msra.mxu0 %v425
  %447 = vmatpush.msra.mxu0 %v409
  %448 = vmatpush.msra.mxu0 %v393
  %449 = vmatpush.msra.mxu0 %v377
  %450 = vmatpush.msra.mxu0 %v297
  %451 = vmatpush.msra.mxu0 %v361
  %452 = vmatpush.msra.mxu0 %v345
  %453 = vmatpush.msra.mxu0 %v329
  %454 = vmatpush.msra.mxu0 %v313
  %455 = vmatmul.f32.gmra.mxu0 %v437
  %v456 = vpop.f32.mrf.mxu0
  %v457 = vadd.f32 %v434, %v456
  %458 = vdwg.mxu0
  %459 = vmatpush.msra.mxu0 0.0
  %460 = vmatpush.msra.mxu0 0.0
  %461 = vmatpush.msra.mxu0 0.0
  %462 = vmatpush.msra.mxu0 0.0
  %463 = vmatpush.msra.mxu0 0.0
  %464 = vmatpush.msra.mxu0 0.0
  %465 = vmatpush.msra.mxu0 0.0
  %466 = vmatpush.msra.mxu0 %v426
  %467 = vmatpush.msra.mxu0 %v410
  %468 = vmatpush.msra.mxu0 %v394
  %469 = vmatpush.msra.mxu0 %v378
  %470 = vmatpush.msra.mxu0 %v298
  %471 = vmatpush.msra.mxu0 %v362
  %472 = vmatpush.msra.mxu0 %v346
  %473 = vmatpush.msra.mxu0 %v330
  %474 = vmatpush.msra.mxu0 %v314
  %475 = vmatmul.f32.gmra.mxu0 %v437
  %v476 = vpop.f32.mrf.mxu0
  %v477 = vadd.f32 %v434, %v476
  %478 = vdwg.mxu0
  %479 = vmatpush.msra.mxu0 0.0
  %480 = vmatpush.msra.mxu0 0.0
  %481 = vmatpush.msra.mxu0 0.0
  %482 = vmatpush.msra.mxu0 0.0
  %483 = vmatpush.msra.mxu0 0.0
  %484 = vmatpush.msra.mxu0 0.0
  %485 = vmatpush.msra.mxu0 0.0
  %486 = vmatpush.msra.mxu0 %v427
  %487 = vmatpush.msra.mxu0 %v411
  %488 = vmatpush.msra.mxu0 %v395
  %489 = vmatpush.msra.mxu0 %v379
  %490 = vmatpush.msra.mxu0 %v299
  %491 = vmatpush.msra.mxu0 %v363
  %492 = vmatpush.msra.mxu0 %v347
  %493 = vmatpush.msra.mxu0 %v331
  %494 = vmatpush.msra.mxu0 %v315
  %495 = vmatmul.f32.gmra.mxu0 %v437
  %v496 = vpop.f32.mrf.mxu0
  %v497 = vadd.f32 %v434, %v496
  %498 = vdwg.mxu0
  %499 = vmatpush.msra.mxu0 0.0
  %500 = vmatpush.msra.mxu0 0.0
  %501 = vmatpush.msra.mxu0 0.0
  %502 = vmatpush.msra.mxu0 0.0
  %503 = vmatpush.msra.mxu0 0.0
  %504 = vmatpush.msra.mxu0 0.0
  %505 = vmatpush.msra.mxu0 0.0
  %506 = vmatpush.msra.mxu0 %v428
  %507 = vmatpush.msra.mxu0 %v412
  %508 = vmatpush.msra.mxu0 %v396
  %509 = vmatpush.msra.mxu0 %v380
  %510 = vmatpush.msra.mxu0 %v300
  %511 = vmatpush.msra.mxu0 %v364
  %512 = vmatpush.msra.mxu0 %v348
  %513 = vmatpush.msra.mxu0 %v332
  %514 = vmatpush.msra.mxu0 %v316
  %515 = vmatmul.f32.gmra.mxu0 %v437
  %v516 = vpop.f32.mrf.mxu0
  %v517 = vadd.f32 %v434, %v516
  %518 = vdwg.mxu0
  %v519 = vmax.f32 %v457, 0.0
  %v520 = vmax.f32 %v477, 0.0
  %v521 = vmax.f32 %v497, 0.0
  %v522 = vmax.f32 %v517, 0.0
  %523 = vst [vmem:[%s6] sm:$0xff] %v519
  %524 = vst [vmem:[%s6 + $0x8] sm:$0xff] %v520
  %s525 = scalar_lea.vmem %s6, 16
  %526 = vst [vmem:[%s525] sm:$0xff] %v521
  %527 = vst [vmem:[%s525 + $0x8] sm:$0xff] %v522
  // Predicated region
  $region26: #{double_conv.1} parent=0 // pred_check
    _
  $region27: #{double_conv.1} parent=0 // pred_check_branch
    %529 = sbr.rel (0) target = $region29
  $region28: #{double_conv.1} parent=0 // pred_region
    _
  $region29: #{double_conv.1} parent=0 // pred_fallthru
    _
  // Predicated region
  $region30: #{double_conv.1} parent=0 // pred_check
    _
  $region31: #{double_conv.1} parent=0 // pred_check_branch
    %531 = sbr.rel (0) target = $region33
  $region32: #{double_conv.1} parent=0 // pred_region
    _
  $region33: #{double_conv.1} parent=0 // pred_fallthru
    _

</llo_original>
